<compile_context>
chip_gen: v5e
topology: v5e:2x2
jax: 0.10.0
libtpu: 0.0.40
codegen_flags: <defaults>
</compile_context>

<pallas_src>
import math

import jax
import jax.numpy as jnp
from jax.experimental import pallas as pl
from jax.experimental.pallas import tpu as pltpu

_LANES = 128


def _copy_kernel(x_ref, o_ref):
    # Straight tile-to-tile move; in/out tiles are shape-identical (tr, 128),
    # so there is no implicit reshape/relayout inside the kernel.
    o_ref[...] = x_ref[...]


def render_layer_forward(x: jax.Array, *, tile_rows: int = 1024) -> jax.Array:
    """Pallas equivalent of RenderLayer.forward: (1, *S) -> (*S) pass-through copy."""
    # TODO(synk): Render(*args, **kwargs) is not defined in the provided spec;
    # only the batch-strip / pass-through data movement is implemented here.
    assert x.shape[0] == 1, "RenderLayer expects a leading batch dim of size 1"
    out_dims = x.shape[1:]
    total = math.prod(out_dims)

    # Lane-dense 2-D slab: (padded_rows, 128). Padding is only needed when the
    # element count is not a multiple of the tile size (not the case here).
    itemsize = jnp.dtype(x.dtype).itemsize
    sublane = {4: 8, 2: 16, 1: 32}.get(itemsize, 8)
    rows = pl.cdiv(total, _LANES)
    tr = min(tile_rows, sublane * pl.cdiv(rows, sublane))   # multiple of sublane
    padded_rows = tr * pl.cdiv(rows, tr)
    padded_total = padded_rows * _LANES

    flat = x.reshape(-1)
    if padded_total != total:
        flat = jnp.concatenate([flat, jnp.zeros((padded_total - total,), x.dtype)])
    x2d = flat.reshape(padded_rows, _LANES)

    y2d = pl.pallas_call(
        _copy_kernel,
        out_shape=jax.ShapeDtypeStruct((padded_rows, _LANES), x.dtype),
        grid_spec=pltpu.PrefetchScalarGridSpec(
            num_scalar_prefetch=0,
            grid=(padded_rows // tr,),
            in_specs=[pl.BlockSpec((tr, _LANES), lambda i: (i, 0))],
            out_specs=pl.BlockSpec((tr, _LANES), lambda i: (i, 0)),
        ),
        compiler_params=pltpu.CompilerParams(
            dimension_semantics=("parallel",),       # shards across v7x's 2 TCs
            vmem_limit_bytes=32 * 1024 * 1024,
        ),
    )(x2d)

    # Undo padding / restore the original (batch-stripped) shape — free
    # metadata ops in XLA when no padding was required.
    return y2d.reshape(-1)[:total].reshape(out_dims)


if __name__ == "__main__":
    key = jax.random.PRNGKey(0)
    # NCHW input consistent with the module: batch=1 (the dim to strip).
    x = jax.random.normal(key, (1, 4, 16, 16), dtype=jnp.float32)

    y = render_layer_forward(x)
    y = jax.block_until_ready(y)

    ref = jnp.squeeze(x, axis=0)
    assert y.shape == (4, 16, 16), y.shape
    assert y.dtype == x.dtype
    assert jnp.array_equal(y, ref)

    print("KERNEL_OK")
</pallas_src>

<mosaic_0001>
module attributes {stable_mosaic.version = 11 : i64} {
  func.func @_copy_kernel(%arg0: i32, %arg1: memref<8x128xf32, #tpu.memory_space<vmem>>, %arg2: memref<8x128xf32, #tpu.memory_space<vmem>>) attributes {dimension_semantics = [#tpu.dimension_semantics<parallel>], iteration_bounds = array<i64: 1>, scalar_prefetch = 0 : i64, scratch_operands = 0 : i64, tpu.core_type = #tpu.core_type<tc>, window_params = [{transform_indices = @transform_0, window_bounds = array<i64: 8, 128>}, {transform_indices = @transform_1, window_bounds = array<i64: 8, 128>}]} {
    %c0 = arith.constant 0 : index
    %c0_0 = arith.constant 0 : index
    %0 = vector.load %arg1[%c0, %c0_0] : memref<8x128xf32, #tpu.memory_space<vmem>>, vector<8x128xf32>
    %c0_1 = arith.constant 0 : index
    %c0_2 = arith.constant 0 : index
    %1 = vector.load %arg2[%c0_1, %c0_2] : memref<8x128xf32, #tpu.memory_space<vmem>>, vector<8x128xf32>
    tpu.vector_store %arg2[%c0_1, %c0_2], %0 {strides = array<i32>} : memref<8x128xf32, #tpu.memory_space<vmem>>, vector<8x128xf32>,
    return
  }
  func.func @transform_0(%arg0: i32) -> (i32, i32) {
    %c0_i32 = arith.constant 0 : i32
    %c0_i32_0 = arith.constant 0 : i32
    return %arg0, %c0_i32 : i32, i32
  }
  func.func @transform_1(%arg0: i32) -> (i32, i32) {
    %c0_i32 = arith.constant 0 : i32
    %c0_i32_0 = arith.constant 0 : i32
    return %arg0, %c0_i32 : i32, i32
  }
}

</mosaic_0001>

<llo_original>
// kernel: tpu_custom_call.1
$region0: #{tpu_custom_call.1}
  #allocation0 [shape = 'u32[]', space=smem, size = 0x4, offset = 0x4, fixed_abs, tag = 'smem constant byte address 0x4 - core index']
  #allocation1 [shape = 'u32[72,128]{1,0:T(1,128)}', space=vmem, size = 0x9000, scoped, tag = 'internal scratch']
  %s0 = inlined_call_operand.hbm [shape: f32[8,128], index: 0, kind: input, shape index: {}]
  %s1 = inlined_call_operand.hbm [shape: f32[8,128], index: 1, kind: output, shape index: {}]
  %s2 = sld [smem:[#allocation0]]
  $region18: #{tpu_custom_call.1} parent=0
    _
  %s4 = ssub.s32 1, %s2
  %s5 = scalar_select 0, %s4, %s2
  $region1: #{tpu_custom_call.1} parent=0
    #allocation2 [shape = 'u8[4096]{0}', space=vmem, size = 0x1000, scoped, tag = 'input window, operand 0, single buffered']
    #allocation3 [shape = 's32[1]{0}', space=sflag, size = 0x4, scoped, tag = 'scoped memory for tpu_custom_call.1']
    #allocation4 [shape = 's32[1]{0}', space=sflag, size = 0x4, scoped, tag = 'scoped memory for tpu_custom_call.1']
    #allocation5 [shape = 'u8[4096]{0}', space=vmem, size = 0x1000, scoped, tag = 'output window, operand 0, single buffered']
    %6 = vsyncpa [#allocation3], 0
    %7 = vsyncpa [#allocation4], 0
    // Predicated region
    $region2: #{tpu_custom_call.1} parent=1 // pred_check
      _
    $region3: #{tpu_custom_call.1} parent=1 // pred_check_branch
      %9 = sbr.rel (0) target = $region5
    $region4: #{tpu_custom_call.1} parent=1 // pred_region
      %11 = vsyncadd [#allocation3], 0
      %s13 = sshll.u32 %s0, 4
      %s14 = int_to_ptr.hbm [resolvable:$true] %s13
      %s15 = sshll.u32 [#allocation2], 4
      %s16 = int_to_ptr.vmem [resolvable:$true] %s15
      %18 = dma.hbm_to_vmem [thread:$0]  %s14, 128, %s16, [#allocation3]
    $region5: #{tpu_custom_call.1} parent=1 // pred_fallthru
      _
    // Predicated region
    $region6: #{tpu_custom_call.1} parent=1 // pred_check
      _
    $region7: #{tpu_custom_call.1} parent=1 // pred_check_branch
      %20 = sbr.rel (0) target = $region9
    $region8: #{tpu_custom_call.1} parent=1 // pred_region
      %22 = dma.done [#allocation3], 128
    $region9: #{tpu_custom_call.1} parent=1 // pred_fallthru
      _
    %v23 = vld [vmem:[#allocation2] sm:$0xff]
    %24 = vst [vmem:[#allocation5] sm:$0xff] %v23
    // Predicated region
    $region10: #{tpu_custom_call.1} parent=1 // pred_check
      _
    $region11: #{tpu_custom_call.1} parent=1 // pred_check_branch
      %26 = sbr.rel (0) target = $region13
    $region12: #{tpu_custom_call.1} parent=1 // pred_region
      %28 = vsyncadd [#allocation4], 0
      %s30 = sshll.u32 [#allocation5], 4
      %s31 = int_to_ptr.vmem [resolvable:$true] %s30
      %s32 = sshll.u32 %s1, 4
      %s33 = int_to_ptr.hbm [resolvable:$true] %s32
      %35 = dma.vmem_to_hbm [thread:$0]  %s31, 128, %s33, [#allocation4]
    $region13: #{tpu_custom_call.1} parent=1 // pred_fallthru
      _
    // Predicated region
    $region14: #{tpu_custom_call.1} parent=1 // pred_check
      _
    $region15: #{tpu_custom_call.1} parent=1 // pred_check_branch
      %37 = sbr.rel (0) target = $region17
    $region16: #{tpu_custom_call.1} parent=1 // pred_region
      %39 = dma.done [#allocation4], 128
    $region17: #{tpu_custom_call.1} parent=1 // pred_fallthru
      _
    %40 = vsyncpa [#allocation3], 1
    %41 = vsyncpa [#allocation4], 1

</llo_original>
